<compile_context>
chip_gen: v5e
topology: v5e:2x2
jax: 0.10.0
libtpu: 0.0.40
codegen_flags: <defaults>
</compile_context>

<pallas_src>
import functools

import jax
import jax.numpy as jnp
from jax.experimental import pallas as pl
from jax.experimental.pallas import tpu as pltpu


def _nca_kernel(x_ref, mask_ref, w1_ref, b_ref, w2_ref, w3_ref, o_ref,
                *, W, K, Cin, Chid, n_steps):
    N = x_ref.shape[-1]
    p = (K - 1) // 2

    # Static per-tap lane-rotation amounts: rolled[l] == state[l + oy*W + ox].
    shifts = []
    for dy in range(K):
        for dx in range(K):
            off = (dy - p) * W + (dx - p)
            shifts.append((-off) % N)

    # Hoist every load / broadcast out of the (optional) multi-step loop:
    # JAX does not CSE broadcast_in_dim, so these must not live inside step().
    mask = mask_ref[...]                                   # (K*K*Cin, N) f32 {0,1}
    w1 = w1_ref[...]                                       # (Chid, K*K*Cin)
    w2 = w2_ref[...]                                       # (Chid, Chid)
    w3 = w3_ref[...]                                       # (Cin, Chid)
    b_all = b_ref[...]                                     # (2*Chid+Cin, 1)
    b1 = jnp.broadcast_to(b_all[0:Chid, :], (Chid, N))
    b2 = jnp.broadcast_to(b_all[Chid:2 * Chid, :], (Chid, N))
    b3 = jnp.broadcast_to(b_all[2 * Chid:2 * Chid + Cin, :], (Cin, N))

    def step(state):                                       # (Cin, N) -> (Cin, N)
        # im2col: K*K lane rotations (XLU) stacked on sublanes, then one
        # elementwise multiply by the precomputed zero-padding mask (VPU).
        cols = [state if sh == 0 else pltpu.roll(state, shift=sh, axis=1)
                for sh in shifts]
        xcol = jnp.concatenate(cols, axis=0) * mask        # (K*K*Cin, N)

        h = jnp.dot(w1, xcol, preferred_element_type=jnp.float32) + b1
        h = jnp.maximum(h, 0.0)                            # ReLU
        h = jnp.dot(w2, h, preferred_element_type=jnp.float32) + b2
        h = jnp.maximum(h, 0.0)                            # ReLU
        logits = jnp.dot(w3, h, preferred_element_type=jnp.float32) + b3
        return jax.nn.sigmoid(logits)                      # (Cin, N)

    state = x_ref[...]                                     # (Cin, N)
    if n_steps == 1:
        state = step(state)
    else:
        # Unrolled so rolls/selects of step t+1 overlap the MXU/EUP of step t.
        state = jax.lax.fori_loop(0, n_steps, lambda _, s: step(s), state,
                                  unroll=True)
    o_ref[...] = state                                     # lane-dense store


def _build_pad_mask(H, W, K, Cin, imgs):
    """Host-side {0,1} mask for the implicit zero padding of the 'same' conv.

    Shape (K*K*Cin, imgs*H*W); row t*Cin + c is the validity of tap t
    (independent of channel c), tiled over the images folded into lanes.
    """
    p = (K - 1) // 2
    HW = H * W
    lane = jnp.arange(imgs * HW, dtype=jnp.int32)
    local = lane % HW
    yy = local // W
    xx = local % W
    rows = []
    for dy in range(K):
        for dx in range(K):
            oy, ox = dy - p, dx - p
            valid = ((yy + oy >= 0) & (yy + oy < H)
                     & (xx + ox >= 0) & (xx + ox < W))
            rows.append(valid.astype(jnp.float32))
    mask2d = jnp.stack(rows, axis=0)                       # (K*K, imgs*HW)
    return jnp.repeat(mask2d[:, None, :], Cin, axis=1).reshape(
        K * K * Cin, imgs * HW)


def maze_nca_forward(x_nchw, params, *, kernel_size, n_steps=1,
                     num_blocks=1, core_parallel=False):
    """Apply the NCA update `n_steps` times (module.forward == 1 step).

    Args:
      x_nchw: (B, Cin, H, W) float32 input (torch NCHW layout).
      params: torch-layout parameters:
        w1 (Chid, Cin, K, K), b1 (Chid,), w2 (Chid, Chid), b2 (Chid,),
        w3 (Cin, Chid), b3 (Cin,).
      kernel_size: K (odd, as asserted by the torch module).
      n_steps: number of NCA iterations fused inside the kernel.
      num_blocks: split the batch into this many grid steps (default 1:
        whole batch folded into lanes — best on single-TC v5e/v6e).
      core_parallel: with num_blocks>1, mark the grid axis CORE_PARALLEL to
        shard blocks across TensorCores (use num_blocks=2 on v7x).
    Returns:
      (B, Cin, H, W) float32 output.
    """
    B, Cin, H, W = x_nchw.shape
    K = kernel_size
    assert K % 2 == 1, "kernel_size must be odd (matches the torch module)."
    Chid = params["w2"].shape[0]
    HW = H * W
    assert B % num_blocks == 0, "num_blocks must divide the batch."
    imgs = B // num_blocks
    N = imgs * HW
    # Layout assumptions of the lane-dense kernel (true for 16x16, Cin=8).
    assert N % 128 == 0, "images_per_block * H * W must be a multiple of 128."
    assert Cin % 8 == 0, "n_in_chan must be a multiple of 8 for sublane alignment."

    # One-time tiny weight repack: (Chid, Cin, K, K) -> (Chid, K*K*Cin) with
    # column index (dy*K + dx)*Cin + c, matching the kernel's im2col row order.
    w1_mat = jnp.transpose(params["w1"], (0, 2, 3, 1)).reshape(Chid, K * K * Cin)
    w2 = params["w2"].reshape(Chid, Chid)
    w3 = params["w3"].reshape(Cin, Chid)
    # Merge the three bias vectors into one resident input (1 DMA, not 3).
    b_all = jnp.concatenate([params["b1"].reshape(Chid, 1),
                             params["b2"].reshape(Chid, 1),
                             params["b3"].reshape(Cin, 1)], axis=0)

    # Host-precomputed zero-padding mask, identical for every block.
    mask = _build_pad_mask(H, W, K, Cin, imgs)             # (K*K*Cin, N)

    # Fold batch into the lane axis: lane index = b*HW + y*W + x.
    x_flat = jnp.transpose(x_nchw, (1, 0, 2, 3)).reshape(Cin, B * HW)

    kernel = functools.partial(_nca_kernel, W=W, K=K, Cin=Cin, Chid=Chid,
                               n_steps=n_steps)

    if num_blocks > 1 and core_parallel:
        dims = (pltpu.CORE_PARALLEL,)      # engage both v7x TensorCores
    else:
        dims = (pltpu.ARBITRARY,)          # single TC: 'parallel' buys nothing

    out_flat = pl.pallas_call(
        kernel,
        out_shape=jax.ShapeDtypeStruct((Cin, B * HW), jnp.float32),
        grid_spec=pltpu.PrefetchScalarGridSpec(
            num_scalar_prefetch=0,
            grid=(num_blocks,),
            in_specs=[
                pl.BlockSpec((Cin, N), lambda g: (0, g)),               # state
                pl.BlockSpec((K * K * Cin, N), lambda g: (0, 0)),       # mask
                pl.BlockSpec((Chid, K * K * Cin), lambda g: (0, 0)),    # w1
                pl.BlockSpec((2 * Chid + Cin, 1), lambda g: (0, 0)),    # biases
                pl.BlockSpec((Chid, Chid), lambda g: (0, 0)),           # w2
                pl.BlockSpec((Cin, Chid), lambda g: (0, 0)),            # w3
            ],
            out_specs=pl.BlockSpec((Cin, N), lambda g: (0, g)),
        ),
        compiler_params=pltpu.CompilerParams(dimension_semantics=dims),
    )(x_flat, mask, w1_mat, b_all, w2, w3)

    return jnp.transpose(out_flat.reshape(Cin, B, H, W), (1, 0, 2, 3))


def _reference_forward(x_nchw, params, *, kernel_size, n_steps=1):
    """Pure-JAX reference (lax conv in NCHW/OIHW), same math as the torch module."""
    Cin = x_nchw.shape[1]
    Chid = params["w2"].shape[0]
    w1 = params["w1"]  # (Chid, Cin, K, K)
    hi = jax.lax.Precision.HIGHEST
    dn = jax.lax.conv_dimension_numbers(x_nchw.shape, w1.shape,
                                        ("NCHW", "OIHW", "NCHW"))

    def step(x):
        h = jax.lax.conv_general_dilated(x, w1, (1, 1), "SAME",
                                         dimension_numbers=dn, precision=hi)
        h = jnp.maximum(h + params["b1"].reshape(1, Chid, 1, 1), 0.0)
        h = jnp.einsum("oc,bchw->bohw", params["w2"], h, precision=hi) \
            + params["b2"].reshape(1, Chid, 1, 1)
        h = jnp.maximum(h, 0.0)
        out = jnp.einsum("oc,bchw->bohw", params["w3"], h, precision=hi) \
            + params["b3"].reshape(1, Cin, 1, 1)
        return jax.nn.sigmoid(out)

    x = x_nchw
    for _ in range(n_steps):
        x = step(x)
    return x


if __name__ == "__main__":
    # Module config: nc=4, n_aux_chan=4 -> n_in_chan=8, kernel_size=3, n_hid_chan=32
    nc, n_aux_chan, kernel_size, n_hid_chan = 4, 4, 3, 32
    n_in_chan = nc + n_aux_chan
    B, H, W = 2, 16, 16

    key = jax.random.PRNGKey(0)
    keys = jax.random.split(key, 7)

    # Deterministic synthetic parameters, in the native torch Conv2d layouts.
    params = {
        "w1": 0.1 * jax.random.normal(
            keys[0], (n_hid_chan, n_in_chan, kernel_size, kernel_size), jnp.float32),
        "b1": 0.1 * jax.random.normal(keys[1], (n_hid_chan,), jnp.float32),
        "w2": 0.1 * jax.random.normal(keys[2], (n_hid_chan, n_hid_chan), jnp.float32),
        "b2": 0.1 * jax.random.normal(keys[3], (n_hid_chan,), jnp.float32),
        "w3": 0.1 * jax.random.normal(keys[4], (n_in_chan, n_hid_chan), jnp.float32),
        "b3": 0.1 * jax.random.normal(keys[5], (n_in_chan,), jnp.float32),
    }

    # Input in the torch NCHW layout: (B, n_in_chan, H, W).
    x = jax.random.normal(keys[6], (B, n_in_chan, H, W), jnp.float32)

    # Single NCA step == module.forward; whole batch in one grid step.
    out = maze_nca_forward(x, params, kernel_size=kernel_size)
    out = jax.block_until_ready(out)
    ref = _reference_forward(x, params, kernel_size=kernel_size)
    assert out.shape == (B, n_in_chan, H, W)
    assert jnp.allclose(out, ref, atol=1e-5, rtol=1e-5), "mismatch vs reference (1 step)"

    # Blocked path (one image per grid step), e.g. for v7x core-parallel use.
    out_b = jax.block_until_ready(
        maze_nca_forward(x, params, kernel_size=kernel_size, num_blocks=B))
    assert jnp.allclose(out_b, ref, atol=1e-5, rtol=1e-5), "mismatch vs reference (blocked)"

    # Fused multi-step (state + weights + mask stay resident for all steps).
    out4 = jax.block_until_ready(
        maze_nca_forward(x, params, kernel_size=kernel_size, n_steps=4))
    ref4 = _reference_forward(x, params, kernel_size=kernel_size, n_steps=4)
    assert jnp.allclose(out4, ref4, atol=1e-4, rtol=1e-4), "mismatch vs reference (4 steps)"

    print("KERNEL_OK")
</pallas_src>

<mosaic_0001>
module attributes {stable_mosaic.version = 11 : i64} {
  func.func @_nca_kernel(%arg0: i32, %arg1: memref<8x512xf32, #tpu.memory_space<vmem>>, %arg2: memref<72x512xf32, #tpu.memory_space<vmem>>, %arg3: memref<32x72xf32, #tpu.memory_space<vmem>>, %arg4: memref<72x1xf32, #tpu.memory_space<vmem>>, %arg5: memref<32x32xf32, #tpu.memory_space<vmem>>, %arg6: memref<8x32xf32, #tpu.memory_space<vmem>>, %arg7: memref<8x512xf32, #tpu.memory_space<vmem>>) attributes {dimension_semantics = [#tpu.dimension_semantics<arbitrary>], iteration_bounds = array<i64: 1>, scalar_prefetch = 0 : i64, scratch_operands = 0 : i64, tpu.core_type = #tpu.core_type<tc>, window_params = [{transform_indices = @transform_0, window_bounds = array<i64: 8, 512>}, {pipeline_mode = #tpu.pipeline_mode<synchronous>, transform_indices = @transform_1, window_bounds = array<i64: 72, 512>}, {pipeline_mode = #tpu.pipeline_mode<synchronous>, transform_indices = @transform_2, window_bounds = array<i64: 32, 72>}, {pipeline_mode = #tpu.pipeline_mode<synchronous>, transform_indices = @transform_3, window_bounds = array<i64: 72, 1>}, {pipeline_mode = #tpu.pipeline_mode<synchronous>, transform_indices = @transform_4, window_bounds = array<i64: 32, 32>}, {pipeline_mode = #tpu.pipeline_mode<synchronous>, transform_indices = @transform_5, window_bounds = array<i64: 8, 32>}, {transform_indices = @transform_6, window_bounds = array<i64: 8, 512>}]} {
    %c0 = arith.constant 0 : index
    %c0_0 = arith.constant 0 : index
    %0 = vector.load %arg2[%c0, %c0_0] : memref<72x512xf32, #tpu.memory_space<vmem>>, vector<72x512xf32>
    %c0_1 = arith.constant 0 : index
    %c0_2 = arith.constant 0 : index
    %1 = vector.load %arg3[%c0_1, %c0_2] : memref<32x72xf32, #tpu.memory_space<vmem>>, vector<32x72xf32>
    %c0_3 = arith.constant 0 : index
    %c0_4 = arith.constant 0 : index
    %2 = vector.load %arg5[%c0_3, %c0_4] : memref<32x32xf32, #tpu.memory_space<vmem>>, vector<32x32xf32>
    %c0_5 = arith.constant 0 : index
    %c0_6 = arith.constant 0 : index
    %3 = vector.load %arg6[%c0_5, %c0_6] : memref<8x32xf32, #tpu.memory_space<vmem>>, vector<8x32xf32>
    %c0_7 = arith.constant 0 : index
    %c0_8 = arith.constant 0 : index
    %4 = vector.load %arg4[%c0_7, %c0_8] : memref<72x1xf32, #tpu.memory_space<vmem>>, vector<72x1xf32>
    %5 = vector.extract_strided_slice %4 {offsets = [0, 0], sizes = [32, 1], strides = [1, 1]} : vector<72x1xf32> to vector<32x1xf32>
    %6 = vector.shape_cast %5 : vector<32x1xf32> to vector<32x1xf32>
    %7 = vector.broadcast %6 : vector<32x1xf32> to vector<32x512xf32>
    %8 = vector.extract_strided_slice %4 {offsets = [32, 0], sizes = [32, 1], strides = [1, 1]} : vector<72x1xf32> to vector<32x1xf32>
    %9 = vector.shape_cast %8 : vector<32x1xf32> to vector<32x1xf32>
    %10 = vector.broadcast %9 : vector<32x1xf32> to vector<32x512xf32>
    %11 = vector.extract_strided_slice %4 {offsets = [64, 0], sizes = [8, 1], strides = [1, 1]} : vector<72x1xf32> to vector<8x1xf32>
    %12 = vector.shape_cast %11 : vector<8x1xf32> to vector<8x1xf32>
    %13 = vector.broadcast %12 : vector<8x1xf32> to vector<8x512xf32>
    %c0_9 = arith.constant 0 : index
    %c0_10 = arith.constant 0 : index
    %14 = vector.load %arg1[%c0_9, %c0_10] : memref<8x512xf32, #tpu.memory_space<vmem>>, vector<8x512xf32>
    %c17_i32 = arith.constant 17 : i32
    %15 = tpu.dynamic_rotate %14 by %c17_i32 dim 1 : vector<8x512xf32>, i32 -> vector<8x512xf32>
    %c16_i32 = arith.constant 16 : i32
    %16 = tpu.dynamic_rotate %14 by %c16_i32 dim 1 : vector<8x512xf32>, i32 -> vector<8x512xf32>
    %c15_i32 = arith.constant 15 : i32
    %17 = tpu.dynamic_rotate %14 by %c15_i32 dim 1 : vector<8x512xf32>, i32 -> vector<8x512xf32>
    %c1_i32 = arith.constant 1 : i32
    %18 = tpu.dynamic_rotate %14 by %c1_i32 dim 1 : vector<8x512xf32>, i32 -> vector<8x512xf32>
    %c511_i32 = arith.constant 511 : i32
    %19 = tpu.dynamic_rotate %14 by %c511_i32 dim 1 : vector<8x512xf32>, i32 -> vector<8x512xf32>
    %c497_i32 = arith.constant 497 : i32
    %20 = tpu.dynamic_rotate %14 by %c497_i32 dim 1 : vector<8x512xf32>, i32 -> vector<8x512xf32>
    %c496_i32 = arith.constant 496 : i32
    %21 = tpu.dynamic_rotate %14 by %c496_i32 dim 1 : vector<8x512xf32>, i32 -> vector<8x512xf32>
    %c495_i32 = arith.constant 495 : i32
    %22 = tpu.dynamic_rotate %14 by %c495_i32 dim 1 : vector<8x512xf32>, i32 -> vector<8x512xf32>
    %23 = tpu.concatenate %15, %16, %17, %18, %14, %19, %20, %21, %22 in 0 : vector<8x512xf32>, vector<8x512xf32>, vector<8x512xf32>, vector<8x512xf32>, vector<8x512xf32>, vector<8x512xf32>, vector<8x512xf32>, vector<8x512xf32>, vector<8x512xf32> -> vector<72x512xf32>
    %24 = arith.mulf %23, %0 : vector<72x512xf32>
    %cst = arith.constant dense<0.000000e+00> : vector<32x512xf32>
    %25 = tpu.matmul %1, %24, %cst {dimension_numbers = #tpu.dot_dimension_numbers<[1], [0], [0], [1], [0, 0, 1, 1], [], []>} : vector<32x72xf32>, vector<72x512xf32>, vector<32x512xf32> -> vector<32x512xf32>
    %26 = arith.addf %25, %7 : vector<32x512xf32>
    %cst_11 = arith.constant 0.000000e+00 : f32
    %27 = vector.broadcast %cst_11 : f32 to vector<32x512xf32>
    %28 = arith.maximumf %26, %27 : vector<32x512xf32>
    %cst_12 = arith.constant dense<0.000000e+00> : vector<32x512xf32>
    %29 = tpu.matmul %2, %28, %cst_12 {dimension_numbers = #tpu.dot_dimension_numbers<[1], [0], [0], [1], [0, 0, 1, 1], [], []>} : vector<32x32xf32>, vector<32x512xf32>, vector<32x512xf32> -> vector<32x512xf32>
    %30 = arith.addf %29, %10 : vector<32x512xf32>
    %cst_13 = arith.constant 0.000000e+00 : f32
    %31 = vector.broadcast %cst_13 : f32 to vector<32x512xf32>
    %32 = arith.maximumf %30, %31 : vector<32x512xf32>
    %cst_14 = arith.constant dense<0.000000e+00> : vector<8x512xf32>
    %33 = tpu.matmul %3, %32, %cst_14 {dimension_numbers = #tpu.dot_dimension_numbers<[1], [0], [0], [1], [0, 0, 1, 1], [], []>} : vector<8x32xf32>, vector<32x512xf32>, vector<8x512xf32> -> vector<8x512xf32>
    %34 = arith.addf %33, %13 : vector<8x512xf32>
    %35 = arith.negf %34 : vector<8x512xf32>
    %36 = math.exp %35 : vector<8x512xf32>
    %cst_15 = arith.constant 1.000000e+00 : f32
    %37 = vector.broadcast %cst_15 : f32 to vector<8x512xf32>
    %38 = arith.addf %37, %36 : vector<8x512xf32>
    %39 = arith.divf %37, %38 : vector<8x512xf32>
    %c0_16 = arith.constant 0 : index
    %c0_17 = arith.constant 0 : index
    %40 = vector.load %arg7[%c0_16, %c0_17] : memref<8x512xf32, #tpu.memory_space<vmem>>, vector<8x512xf32>
    tpu.vector_store %arg7[%c0_16, %c0_17], %39 {strides = array<i32>} : memref<8x512xf32, #tpu.memory_space<vmem>>, vector<8x512xf32>,
    return
  }
  func.func @transform_0(%arg0: i32) -> (i32, i32) {
    %c0_i32 = arith.constant 0 : i32
    %c0_i32_0 = arith.constant 0 : i32
    return %c0_i32, %arg0 : i32, i32
  }
  func.func @transform_1(%arg0: i32) -> (i32, i32) {
    %c0_i32 = arith.constant 0 : i32
    %c0_i32_0 = arith.constant 0 : i32
    %c0_i32_1 = arith.constant 0 : i32
    return %c0_i32, %c0_i32_0 : i32, i32
  }
  func.func @transform_2(%arg0: i32) -> (i32, i32) {
    %c0_i32 = arith.constant 0 : i32
    %c0_i32_0 = arith.constant 0 : i32
    %c0_i32_1 = arith.constant 0 : i32
    return %c0_i32, %c0_i32_0 : i32, i32
  }
  func.func @transform_3(%arg0: i32) -> (i32, i32) {
    %c0_i32 = arith.constant 0 : i32
    %c0_i32_0 = arith.constant 0 : i32
    %c0_i32_1 = arith.constant 0 : i32
    return %c0_i32, %c0_i32_0 : i32, i32
  }
  func.func @transform_4(%arg0: i32) -> (i32, i32) {
    %c0_i32 = arith.constant 0 : i32
    %c0_i32_0 = arith.constant 0 : i32
    %c0_i32_1 = arith.constant 0 : i32
    return %c0_i32, %c0_i32_0 : i32, i32
  }
  func.func @transform_5(%arg0: i32) -> (i32, i32) {
    %c0_i32 = arith.constant 0 : i32
    %c0_i32_0 = arith.constant 0 : i32
    %c0_i32_1 = arith.constant 0 : i32
    return %c0_i32, %c0_i32_0 : i32, i32
  }
  func.func @transform_6(%arg0: i32) -> (i32, i32) {
    %c0_i32 = arith.constant 0 : i32
    %c0_i32_0 = arith.constant 0 : i32
    return %c0_i32, %arg0 : i32, i32
  }
}

</mosaic_0001>

<llo_original>
// kernel: tpu_custom_call.1
$region0: #{tpu_custom_call.1}
  #allocation0 [shape = 'u32[]', space=smem, size = 0x4, offset = 0x4, fixed_abs, tag = 'smem constant byte address 0x4 - core index']
  #allocation1 [shape = 'u32[72,128]{1,0:T(1,128)}', space=vmem, size = 0x9000, scoped, tag = 'internal scratch']
  %s0 = inlined_call_operand.vmem [shape: f32[8,512], index: 0, kind: input, shape index: {}]
  %s1 = inlined_call_operand.hbm [shape: f32[72,512], index: 1, kind: input, shape index: {}]
  %s2 = inlined_call_operand.vmem [shape: f32[32,72], index: 2, kind: input, shape index: {}]
  %s3 = inlined_call_operand.vmem [shape: f32[72,1], index: 3, kind: input, shape index: {}]
  %s4 = inlined_call_operand.hbm [shape: f32[32,32], index: 4, kind: input, shape index: {}]
  %s5 = inlined_call_operand.vmem [shape: f32[8,32], index: 5, kind: input, shape index: {}]
  %s6 = inlined_call_operand.hbm [shape: f32[8,512], index: 6, kind: output, shape index: {}]
  %s7 = sld [smem:[#allocation0]]
  $region42: #{tpu_custom_call.1} parent=0
    _
  %s9 = ssub.s32 1, %s7
  %s10 = scalar_select 0, %s9, %s7
  $region1: #{tpu_custom_call.1} parent=0
    #allocation2 [shape = 'u8[147456]{0}', space=vmem, size = 0x24000, scoped, tag = 'input window, operand 1, single buffered']
    #allocation3 [shape = 's32[1]{0}', space=sflag, size = 0x4, scoped, tag = 'scoped memory for tpu_custom_call.1']
    #allocation4 [shape = 's32[1]{0}', space=sflag, size = 0x4, scoped, tag = 'scoped memory for tpu_custom_call.1']
    #allocation5 [shape = 'u8[16384]{0}', space=vmem, size = 0x4000, scoped, tag = 'input window, operand 4, single buffered']
    #allocation6 [shape = 's32[1]{0}', space=sflag, size = 0x4, scoped, tag = 'scoped memory for tpu_custom_call.1']
    #allocation7 [shape = 'u8[16384]{0}', space=vmem, size = 0x4000, scoped, tag = 'output window, operand 0, single buffered']
    %11 = vsyncpa [#allocation3], 0
    %12 = vsyncpa [#allocation6], 0
    %13 = vsyncpa [#allocation4], 0
    // Predicated region
    $region2: #{tpu_custom_call.1} parent=1 // pred_check
      _
    $region3: #{tpu_custom_call.1} parent=1 // pred_check_branch
      %15 = sbr.rel (0) target = $region5
    $region4: #{tpu_custom_call.1} parent=1 // pred_region
      _
    $region5: #{tpu_custom_call.1} parent=1 // pred_fallthru
      _
    // Predicated region
    $region6: #{tpu_custom_call.1} parent=1 // pred_check
      _
    $region7: #{tpu_custom_call.1} parent=1 // pred_check_branch
      %17 = sbr.rel (0) target = $region9
    $region8: #{tpu_custom_call.1} parent=1 // pred_region
      %19 = vsyncadd [#allocation3], 0
      %s20 = sshll.u32 %s1, 4
      %s21 = int_to_ptr.hbm [resolvable:$true] %s20
      %s22 = sshll.u32 [#allocation2], 4
      %s23 = int_to_ptr.vmem [resolvable:$true] %s22
      %28 = dma.hbm_to_vmem [thread:$0]  %s21, 4608, %s23, [#allocation3], 512, 512, 32
    $region9: #{tpu_custom_call.1} parent=1 // pred_fallthru
      _
    // Predicated region
    $region10: #{tpu_custom_call.1} parent=1 // pred_check
      _
    $region11: #{tpu_custom_call.1} parent=1 // pred_check_branch
      %30 = sbr.rel (0) target = $region13
    $region12: #{tpu_custom_call.1} parent=1 // pred_region
      _
    $region13: #{tpu_custom_call.1} parent=1 // pred_fallthru
      _
    // Predicated region
    $region14: #{tpu_custom_call.1} parent=1 // pred_check
      _
    $region15: #{tpu_custom_call.1} parent=1 // pred_check_branch
      %32 = sbr.rel (0) target = $region17
    $region16: #{tpu_custom_call.1} parent=1 // pred_region
      _
    $region17: #{tpu_custom_call.1} parent=1 // pred_fallthru
      _
    // Predicated region
    $region18: #{tpu_custom_call.1} parent=1 // pred_check
      _
    $region19: #{tpu_custom_call.1} parent=1 // pred_check_branch
      %34 = sbr.rel (0) target = $region21
    $region20: #{tpu_custom_call.1} parent=1 // pred_region
      %36 = vsyncadd [#allocation6], 0
      %s37 = sshll.u32 %s4, 4
      %s38 = int_to_ptr.hbm [resolvable:$true] %s37
      %s39 = sshll.u32 [#allocation5], 4
      %s40 = int_to_ptr.vmem [resolvable:$true] %s39
      %45 = dma.hbm_to_vmem [thread:$0]  %s38, 512, %s40, [#allocation6], 128, 128, 8
    $region21: #{tpu_custom_call.1} parent=1 // pred_fallthru
      _
    // Predicated region
    $region22: #{tpu_custom_call.1} parent=1 // pred_check
      _
    $region23: #{tpu_custom_call.1} parent=1 // pred_check_branch
      %47 = sbr.rel (0) target = $region25
    $region24: #{tpu_custom_call.1} parent=1 // pred_region
      _
    $region25: #{tpu_custom_call.1} parent=1 // pred_fallthru
      _
    // Predicated region
    $region26: #{tpu_custom_call.1} parent=1 // pred_check
      _
    $region27: #{tpu_custom_call.1} parent=1 // pred_check_branch
      %49 = sbr.rel (0) target = $region29
    $region28: #{tpu_custom_call.1} parent=1 // pred_region
      %51 = dma.done [#allocation3], 4608
    $region29: #{tpu_custom_call.1} parent=1 // pred_fallthru
      _
    // Predicated region
    $region30: #{tpu_custom_call.1} parent=1 // pred_check
      _
    $region31: #{tpu_custom_call.1} parent=1 // pred_check_branch
      %53 = sbr.rel (0) target = $region33
    $region32: #{tpu_custom_call.1} parent=1 // pred_region
      %55 = dma.done [#allocation6], 512
    $region33: #{tpu_custom_call.1} parent=1 // pred_fallthru
      _
    %v56 = vld [vmem:[#allocation2] sm:$0xff]
    %v57 = vld [vmem:[#allocation2 + $0x8] sm:$0xff]
    %v58 = vld [vmem:[#allocation2 + $0x10] sm:$0xff]
    %v59 = vld [vmem:[#allocation2 + $0x18] sm:$0xff]
    %v60 = vld [vmem:[#allocation2 + $0x20] sm:$0xff]
    %v61 = vld [vmem:[#allocation2 + $0x28] sm:$0xff]
    %v62 = vld [vmem:[#allocation2 + $0x30] sm:$0xff]
    %v63 = vld [vmem:[#allocation2 + $0x38] sm:$0xff]
    %v64 = vld [vmem:[#allocation2 + $0x40] sm:$0xff]
    %v65 = vld [vmem:[#allocation2 + $0x48] sm:$0xff]
    %v66 = vld [vmem:[#allocation2 + $0x50] sm:$0xff]
    %v67 = vld [vmem:[#allocation2 + $0x58] sm:$0xff]
    %v68 = vld [vmem:[#allocation2 + $0x60] sm:$0xff]
    %v69 = vld [vmem:[#allocation2 + $0x68] sm:$0xff]
    %v70 = vld [vmem:[#allocation2 + $0x70] sm:$0xff]
    %v71 = vld [vmem:[#allocation2 + $0x78] sm:$0xff]
    %v72 = vld [vmem:[#allocation2 + $0x80] sm:$0xff]
    %v73 = vld [vmem:[#allocation2 + $0x88] sm:$0xff]
    %v74 = vld [vmem:[#allocation2 + $0x90] sm:$0xff]
    %v75 = vld [vmem:[#allocation2 + $0x98] sm:$0xff]
    %v76 = vld [vmem:[#allocation2 + $0xa0] sm:$0xff]
    %v77 = vld [vmem:[#allocation2 + $0xa8] sm:$0xff]
    %v78 = vld [vmem:[#allocation2 + $0xb0] sm:$0xff]
    %v79 = vld [vmem:[#allocation2 + $0xb8] sm:$0xff]
    %v80 = vld [vmem:[#allocation2 + $0xc0] sm:$0xff]
    %v81 = vld [vmem:[#allocation2 + $0xc8] sm:$0xff]
    %v82 = vld [vmem:[#allocation2 + $0xd0] sm:$0xff]
    %v83 = vld [vmem:[#allocation2 + $0xd8] sm:$0xff]
    %v84 = vld [vmem:[#allocation2 + $0xe0] sm:$0xff]
    %v85 = vld [vmem:[#allocation2 + $0xe8] sm:$0xff]
    %v86 = vld [vmem:[#allocation2 + $0xf0] sm:$0xff]
    %v87 = vld [vmem:[#allocation2 + $0xf8] sm:$0xff]
    %v88 = vld [vmem:[#allocation2 + $0x100] sm:$0xff]
    %v89 = vld [vmem:[#allocation2 + $0x108] sm:$0xff]
    %v90 = vld [vmem:[#allocation2 + $0x110] sm:$0xff]
    %v91 = vld [vmem:[#allocation2 + $0x118] sm:$0xff]
    %v92 = vld [vmem:[%s2] sm:$0xff]
    %v93 = vld [vmem:[%s2 + $0x8] sm:$0xff]
    %v94 = vld [vmem:[%s2 + $0x10] sm:$0xff]
    %v95 = vld [vmem:[%s2 + $0x18] sm:$0xff]
    %v96 = vld [vmem:[#allocation5] sm:$0xff]
    %v97 = vld [vmem:[#allocation5 + $0x8] sm:$0xff]
    %v98 = vld [vmem:[#allocation5 + $0x10] sm:$0xff]
    %v99 = vld [vmem:[#allocation5 + $0x18] sm:$0xff]
    %v100 = vld [vmem:[%s5] sm:$0xff]
    %v101 = vld [vmem:[%s3] sm:$0xff]
    %v102 = vld [vmem:[%s3 + $0x8] sm:$0xff]
    %v103 = vld [vmem:[%s3 + $0x10] sm:$0xff]
    %v104 = vld [vmem:[%s3 + $0x18] sm:$0xff]
    %v105 = vld [vmem:[%s3 + $0x20] sm:$0xff]
    %v106 = vld [vmem:[%s3 + $0x28] sm:$0xff]
    %v107 = vld [vmem:[%s3 + $0x30] sm:$0xff]
    %v108 = vld [vmem:[%s3 + $0x38] sm:$0xff]
    %v109 = vld [vmem:[%s3 + $0x40] sm:$0xff]
    %111 = vset.pattern.permute.xlu0 0
    %112 = vperm.xlu0 %111, %v101
    %v113 = vpop.permute.xlu0 %112
    %116 = vset.pattern.permute.xlu0 0
    %117 = vperm.xlu0 %116, %v102
    %v118 = vpop.permute.xlu0 %117
    %121 = vset.pattern.permute.xlu0 0
    %122 = vperm.xlu0 %121, %v103
    %v123 = vpop.permute.xlu0 %122
    %126 = vset.pattern.permute.xlu0 0
    %127 = vperm.xlu0 %126, %v104
    %v128 = vpop.permute.xlu0 %127
    %131 = vset.pattern.permute.xlu0 0
    %132 = vperm.xlu0 %131, %v105
    %v133 = vpop.permute.xlu0 %132
    %136 = vset.pattern.permute.xlu0 0
    %137 = vperm.xlu0 %136, %v106
    %v138 = vpop.permute.xlu0 %137
    %141 = vset.pattern.permute.xlu0 0
    %142 = vperm.xlu0 %141, %v107
    %v143 = vpop.permute.xlu0 %142
    %146 = vset.pattern.permute.xlu0 0
    %147 = vperm.xlu0 %146, %v108
    %v148 = vpop.permute.xlu0 %147
    %151 = vset.pattern.permute.xlu0 0
    %152 = vperm.xlu0 %151, %v109
    %v153 = vpop.permute.xlu0 %152
    %v155 = vld [vmem:[%s0] sm:$0xff]
    %v156 = vld [vmem:[%s0 + $0x8] sm:$0xff]
    %v157 = vld [vmem:[%s0 + $0x10] sm:$0xff]
    %v158 = vld [vmem:[%s0 + $0x18] sm:$0xff]
    %159 = vrot.lane.b32.xlu0 %v155, 17
    %v160 = vpop.permute.xlu0 %159
    %161 = vrot.lane.b32.xlu0 %v156, 17
    %v162 = vpop.permute.xlu0 %161
    %163 = vrot.lane.b32.xlu0 %v157, 17
    %v164 = vpop.permute.xlu0 %163
    %165 = vrot.lane.b32.xlu0 %v158, 17
    %v166 = vpop.permute.xlu0 %165
    %v167 = vlaneseq
    %v168 = vand.u32 %v167, 127
    %vm169 = vcmp.lt.s32.totalorder %v168, 17
    %v170 = vsel %vm169, %v164, %v166
    %v171 = vsel %vm169, %v162, %v164
    %v172 = vsel %vm169, %v160, %v162
    %v173 = vsel %vm169, %v166, %v160
    %174 = vrot.lane.b32.xlu0 %v155, 16
    %v175 = vpop.permute.xlu0 %174
    %176 = vrot.lane.b32.xlu0 %v156, 16
    %v177 = vpop.permute.xlu0 %176
    %178 = vrot.lane.b32.xlu0 %v157, 16
    %v179 = vpop.permute.xlu0 %178
    %180 = vrot.lane.b32.xlu0 %v158, 16
    %v181 = vpop.permute.xlu0 %180
    %vm182 = vcmp.lt.s32.totalorder %v168, 16
    %v183 = vsel %vm182, %v179, %v181
    %v184 = vsel %vm182, %v177, %v179
    %v185 = vsel %vm182, %v175, %v177
    %v186 = vsel %vm182, %v181, %v175
    %187 = vrot.lane.b32.xlu0 %v155, 15
    %v188 = vpop.permute.xlu0 %187
    %189 = vrot.lane.b32.xlu0 %v156, 15
    %v190 = vpop.permute.xlu0 %189
    %191 = vrot.lane.b32.xlu0 %v157, 15
    %v192 = vpop.permute.xlu0 %191
    %193 = vrot.lane.b32.xlu0 %v158, 15
    %v194 = vpop.permute.xlu0 %193
    %vm195 = vcmp.lt.s32.totalorder %v168, 15
    %v196 = vsel %vm195, %v192, %v194
    %v197 = vsel %vm195, %v190, %v192
    %v198 = vsel %vm195, %v188, %v190
    %v199 = vsel %vm195, %v194, %v188
    %200 = vrot.lane.b32.xlu0 %v155, 1
    %v201 = vpop.permute.xlu0 %200
    %202 = vrot.lane.b32.xlu0 %v156, 1
    %v203 = vpop.permute.xlu0 %202
    %204 = vrot.lane.b32.xlu0 %v157, 1
    %v205 = vpop.permute.xlu0 %204
    %206 = vrot.lane.b32.xlu0 %v158, 1
    %v207 = vpop.permute.xlu0 %206
    %vm208 = vcmp.lt.s32.totalorder %v168, 1
    %v209 = vsel %vm208, %v205, %v207
    %v210 = vsel %vm208, %v203, %v205
    %v211 = vsel %vm208, %v201, %v203
    %v212 = vsel %vm208, %v207, %v201
    %213 = vrot.lane.b32.xlu0 %v155, 127
    %v214 = vpop.permute.xlu0 %213
    %215 = vrot.lane.b32.xlu0 %v156, 127
    %v216 = vpop.permute.xlu0 %215
    %217 = vrot.lane.b32.xlu0 %v157, 127
    %v218 = vpop.permute.xlu0 %217
    %219 = vrot.lane.b32.xlu0 %v158, 127
    %v220 = vpop.permute.xlu0 %219
    %vm221 = vcmp.lt.s32.totalorder %v168, 127
    %v222 = vsel %vm221, %v218, %v220
    %v223 = vsel %vm221, %v216, %v218
    %v224 = vsel %vm221, %v214, %v216
    %v225 = vsel %vm221, %v220, %v214
    %226 = vrot.lane.b32.xlu0 %v155, 113
    %v227 = vpop.permute.xlu0 %226
    %228 = vrot.lane.b32.xlu0 %v156, 113
    %v229 = vpop.permute.xlu0 %228
    %230 = vrot.lane.b32.xlu0 %v157, 113
    %v231 = vpop.permute.xlu0 %230
    %232 = vrot.lane.b32.xlu0 %v158, 113
    %v233 = vpop.permute.xlu0 %232
    %vm234 = vcmp.lt.s32.totalorder %v168, 113
    %v235 = vsel %vm234, %v231, %v233
    %v236 = vsel %vm234, %v229, %v231
    %v237 = vsel %vm234, %v227, %v229
    %v238 = vsel %vm234, %v233, %v227
    %239 = vrot.lane.b32.xlu0 %v155, 112
    %v240 = vpop.permute.xlu0 %239
    %241 = vrot.lane.b32.xlu0 %v156, 112
    %v242 = vpop.permute.xlu0 %241
    %243 = vrot.lane.b32.xlu0 %v157, 112
    %v244 = vpop.permute.xlu0 %243
    %245 = vrot.lane.b32.xlu0 %v158, 112
    %v246 = vpop.permute.xlu0 %245
    %vm247 = vcmp.lt.s32.totalorder %v168, 112
    %v248 = vsel %vm247, %v244, %v246
    %v249 = vsel %vm247, %v242, %v244
    %v250 = vsel %vm247, %v240, %v242
    %v251 = vsel %vm247, %v246, %v240
    %252 = vrot.lane.b32.xlu0 %v155, 111
    %v253 = vpop.permute.xlu0 %252
    %254 = vrot.lane.b32.xlu0 %v156, 111
    %v255 = vpop.permute.xlu0 %254
    %256 = vrot.lane.b32.xlu0 %v157, 111
    %v257 = vpop.permute.xlu0 %256
    %258 = vrot.lane.b32.xlu0 %v158, 111
    %v259 = vpop.permute.xlu0 %258
    %vm260 = vcmp.lt.s32.totalorder %v168, 111
    %v261 = vsel %vm260, %v257, %v259
    %v262 = vsel %vm260, %v255, %v257
    %v263 = vsel %vm260, %v253, %v255
    %v264 = vsel %vm260, %v259, %v253
    %v265 = vmul.f32 %v173, %v56
    %v266 = vmul.f32 %v172, %v57
    %v267 = vmul.f32 %v171, %v58
    %v268 = vmul.f32 %v170, %v59
    %v269 = vmul.f32 %v186, %v60
    %v270 = vmul.f32 %v185, %v61
    %v271 = vmul.f32 %v184, %v62
    %v272 = vmul.f32 %v183, %v63
    %v273 = vmul.f32 %v199, %v64
    %v274 = vmul.f32 %v198, %v65
    %v275 = vmul.f32 %v197, %v66
    %v276 = vmul.f32 %v196, %v67
    %v277 = vmul.f32 %v212, %v68
    %v278 = vmul.f32 %v211, %v69
    %v279 = vmul.f32 %v210, %v70
    %v280 = vmul.f32 %v209, %v71
    %v281 = vmul.f32 %v155, %v72
    %v282 = vmul.f32 %v156, %v73
    %v283 = vmul.f32 %v157, %v74
    %v284 = vmul.f32 %v158, %v75
    %v285 = vmul.f32 %v224, %v76
    %v286 = vmul.f32 %v223, %v77
    %v287 = vmul.f32 %v222, %v78
    %v288 = vmul.f32 %v225, %v79
    %v289 = vmul.f32 %v237, %v80
    %v290 = vmul.f32 %v236, %v81
    %v291 = vmul.f32 %v235, %v82
    %v292 = vmul.f32 %v238, %v83
    %v293 = vmul.f32 %v250, %v84
    %v294 = vmul.f32 %v249, %v85
    %v295 = vmul.f32 %v248, %v86
    %v296 = vmul.f32 %v251, %v87
    %v297 = vmul.f32 %v263, %v88
    %v298 = vmul.f32 %v262, %v89
    %v299 = vmul.f32 %v261, %v90
    %v300 = vmul.f32 %v264, %v91
    %vm301 = vcmask 588800
    %v303 = vsel %vm301, %v92, 0
    %v306 = vsel %vm301, %v93, 0
    %v309 = vsel %vm301, %v94, 0
    %v312 = vsel %vm301, %v95, 0
    %314 = vmatpush.msra.mxu0 0.0
    %315 = vmatpush.msra.mxu0 0.0
    %316 = vmatpush.msra.mxu0 0.0
    %317 = vmatpush.msra.mxu0 0.0
    %318 = vmatpush.msra.mxu0 0.0
    %319 = vmatpush.msra.mxu0 0.0
    %320 = vmatpush.msra.mxu0 0.0
    %321 = vmatpush.msra.mxu0 %v297
    %322 = vmatpush.msra.mxu0 %v293
    %323 = vmatpush.msra.mxu0 %v289
    %324 = vmatpush.msra.mxu0 %v285
    %325 = vmatpush.msra.mxu0 %v281
    %326 = vmatpush.msra.mxu0 %v277
    %327 = vmatpush.msra.mxu0 %v273
    %328 = vmatpush.msra.mxu0 %v269
    %329 = vmatpush.msra.mxu0 %v265
    %330 = vmatmul.f32.gmra.mxu0 %v303
    %v331 = vpop.f32.mrf.mxu0
    %v332 = vadd.f32 %v113, %v331
    %333 = vmatmul.f32.gmra.mxu0 %v306
    %v334 = vpop.f32.mrf.mxu0
    %v335 = vadd.f32 %v118, %v334
    %336 = vmatmul.f32.gmra.mxu0 %v309
    %v337 = vpop.f32.mrf.mxu0
    %v338 = vadd.f32 %v123, %v337
    %339 = vmatmul.f32.gmra.mxu0 %v312
    %v340 = vpop.f32.mrf.mxu0
    %v341 = vadd.f32 %v128, %v340
    %342 = vdwg.mxu0
    %343 = vmatpush.msra.mxu0 0.0
    %344 = vmatpush.msra.mxu0 0.0
    %345 = vmatpush.msra.mxu0 0.0
    %346 = vmatpush.msra.mxu0 0.0
    %347 = vmatpush.msra.mxu0 0.0
    %348 = vmatpush.msra.mxu0 0.0
    %349 = vmatpush.msra.mxu0 0.0
    %350 = vmatpush.msra.mxu0 %v298
    %351 = vmatpush.msra.mxu0 %v294
    %352 = vmatpush.msra.mxu0 %v290
    %353 = vmatpush.msra.mxu0 %v286
    %354 = vmatpush.msra.mxu0 %v282
    %355 = vmatpush.msra.mxu0 %v278
    %356 = vmatpush.msra.mxu0 %v274
    %357 = vmatpush.msra.mxu0 %v270
    %358 = vmatpush.msra.mxu0 %v266
    %359 = vmatmul.f32.gmra.mxu0 %v303
    %v360 = vpop.f32.mrf.mxu0
    %v361 = vadd.f32 %v113, %v360
    %362 = vmatmul.f32.gmra.mxu0 %v306
    %v363 = vpop.f32.mrf.mxu0
    %v364 = vadd.f32 %v118, %v363
    %365 = vmatmul.f32.gmra.mxu0 %v309
    %v366 = vpop.f32.mrf.mxu0
    %v367 = vadd.f32 %v123, %v366
    %368 = vmatmul.f32.gmra.mxu0 %v312
    %v369 = vpop.f32.mrf.mxu0
    %v370 = vadd.f32 %v128, %v369
    %371 = vdwg.mxu0
    %372 = vmatpush.msra.mxu0 0.0
    %373 = vmatpush.msra.mxu0 0.0
    %374 = vmatpush.msra.mxu0 0.0
    %375 = vmatpush.msra.mxu0 0.0
    %376 = vmatpush.msra.mxu0 0.0
    %377 = vmatpush.msra.mxu0 0.0
    %378 = vmatpush.msra.mxu0 0.0
    %379 = vmatpush.msra.mxu0 %v299
    %380 = vmatpush.msra.mxu0 %v295
    %381 = vmatpush.msra.mxu0 %v291
    %382 = vmatpush.msra.mxu0 %v287
    %383 = vmatpush.msra.mxu0 %v283
    %384 = vmatpush.msra.mxu0 %v279
    %385 = vmatpush.msra.mxu0 %v275
    %386 = vmatpush.msra.mxu0 %v271
    %387 = vmatpush.msra.mxu0 %v267
    %388 = vmatmul.f32.gmra.mxu0 %v303
    %v389 = vpop.f32.mrf.mxu0
    %v390 = vadd.f32 %v113, %v389
    %391 = vmatmul.f32.gmra.mxu0 %v306
    %v392 = vpop.f32.mrf.mxu0
    %v393 = vadd.f32 %v118, %v392
    %394 = vmatmul.f32.gmra.mxu0 %v309
    %v395 = vpop.f32.mrf.mxu0
    %v396 = vadd.f32 %v123, %v395
    %397 = vmatmul.f32.gmra.mxu0 %v312
    %v398 = vpop.f32.mrf.mxu0
    %v399 = vadd.f32 %v128, %v398
    %400 = vdwg.mxu0
    %401 = vmatpush.msra.mxu0 0.0
    %402 = vmatpush.msra.mxu0 0.0
    %403 = vmatpush.msra.mxu0 0.0
    %404 = vmatpush.msra.mxu0 0.0
    %405 = vmatpush.msra.mxu0 0.0
    %406 = vmatpush.msra.mxu0 0.0
    %407 = vmatpush.msra.mxu0 0.0
    %408 = vmatpush.msra.mxu0 %v300
    %409 = vmatpush.msra.mxu0 %v296
    %410 = vmatpush.msra.mxu0 %v292
    %411 = vmatpush.msra.mxu0 %v288
    %412 = vmatpush.msra.mxu0 %v284
    %413 = vmatpush.msra.mxu0 %v280
    %414 = vmatpush.msra.mxu0 %v276
    %415 = vmatpush.msra.mxu0 %v272
    %416 = vmatpush.msra.mxu0 %v268
    %417 = vmatmul.f32.gmra.mxu0 %v303
    %v418 = vpop.f32.mrf.mxu0
    %v419 = vadd.f32 %v113, %v418
    %420 = vmatmul.f32.gmra.mxu0 %v306
    %v421 = vpop.f32.mrf.mxu0
    %v422 = vadd.f32 %v118, %v421
    %423 = vmatmul.f32.gmra.mxu0 %v309
    %v424 = vpop.f32.mrf.mxu0
    %v425 = vadd.f32 %v123, %v424
    %426 = vmatmul.f32.gmra.mxu0 %v312
    %v427 = vpop.f32.mrf.mxu0
    %v428 = vadd.f32 %v128, %v427
    %429 = vdwg.mxu0
    %v430 = vmax.f32 %v332, 0.0
    %v431 = vmax.f32 %v361, 0.0
    %v432 = vmax.f32 %v390, 0.0
    %v433 = vmax.f32 %v419, 0.0
    %v434 = vmax.f32 %v335, 0.0
    %v435 = vmax.f32 %v364, 0.0
    %v436 = vmax.f32 %v393, 0.0
    %v437 = vmax.f32 %v422, 0.0
    %v438 = vmax.f32 %v338, 0.0
    %v439 = vmax.f32 %v367, 0.0
    %v440 = vmax.f32 %v396, 0.0
    %v441 = vmax.f32 %v425, 0.0
    %v442 = vmax.f32 %v341, 0.0
    %v443 = vmax.f32 %v370, 0.0
    %v444 = vmax.f32 %v399, 0.0
    %v445 = vmax.f32 %v428, 0.0
    %vm446 = vcmask 261120
    %v448 = vsel %vm446, %v96, 0
    %v451 = vsel %vm446, %v97, 0
    %v454 = vsel %vm446, %v98, 0
    %v457 = vsel %vm446, %v99, 0
    %459 = vmatpush.msra.mxu0 0.0
    %460 = vmatpush.msra.mxu0 0.0
    %461 = vmatpush.msra.mxu0 0.0
    %462 = vmatpush.msra.mxu0 0.0
    %463 = vmatpush.msra.mxu0 0.0
    %464 = vmatpush.msra.mxu0 0.0
    %465 = vmatpush.msra.mxu0 0.0
    %466 = vmatpush.msra.mxu0 0.0
    %467 = vmatpush.msra.mxu0 0.0
    %468 = vmatpush.msra.mxu0 0.0
    %469 = vmatpush.msra.mxu0 0.0
    %470 = vmatpush.msra.mxu0 0.0
    %471 = vmatpush.msra.mxu0 %v442
    %472 = vmatpush.msra.mxu0 %v438
    %473 = vmatpush.msra.mxu0 %v434
    %474 = vmatpush.msra.mxu0 %v430
    %475 = vmatmul.f32.gmra.mxu0 %v448
    %v476 = vpop.f32.mrf.mxu0
    %v477 = vadd.f32 %v133, %v476
    %478 = vmatmul.f32.gmra.mxu0 %v451
    %v479 = vpop.f32.mrf.mxu0
    %v480 = vadd.f32 %v138, %v479
    %481 = vmatmul.f32.gmra.mxu0 %v454
    %v482 = vpop.f32.mrf.mxu0
    %v483 = vadd.f32 %v143, %v482
    %484 = vmatmul.f32.gmra.mxu0 %v457
    %v485 = vpop.f32.mrf.mxu0
    %v486 = vadd.f32 %v148, %v485
    %487 = vdwg.mxu0
    %488 = vmatpush.msra.mxu0 0.0
    %489 = vmatpush.msra.mxu0 0.0
    %490 = vmatpush.msra.mxu0 0.0
    %491 = vmatpush.msra.mxu0 0.0
    %492 = vmatpush.msra.mxu0 0.0
    %493 = vmatpush.msra.mxu0 0.0
    %494 = vmatpush.msra.mxu0 0.0
    %495 = vmatpush.msra.mxu0 0.0
    %496 = vmatpush.msra.mxu0 0.0
    %497 = vmatpush.msra.mxu0 0.0
    %498 = vmatpush.msra.mxu0 0.0
    %499 = vmatpush.msra.mxu0 0.0
    %500 = vmatpush.msra.mxu0 %v443
    %501 = vmatpush.msra.mxu0 %v439
    %502 = vmatpush.msra.mxu0 %v435
    %503 = vmatpush.msra.mxu0 %v431
    %504 = vmatmul.f32.gmra.mxu0 %v448
    %v505 = vpop.f32.mrf.mxu0
    %v506 = vadd.f32 %v133, %v505
    %507 = vmatmul.f32.gmra.mxu0 %v451
    %v508 = vpop.f32.mrf.mxu0
    %v509 = vadd.f32 %v138, %v508
    %510 = vmatmul.f32.gmra.mxu0 %v454
    %v511 = vpop.f32.mrf.mxu0
    %v512 = vadd.f32 %v143, %v511
    %513 = vmatmul.f32.gmra.mxu0 %v457
    %v514 = vpop.f32.mrf.mxu0
    %v515 = vadd.f32 %v148, %v514
    %516 = vdwg.mxu0
    %517 = vmatpush.msra.mxu0 0.0
    %518 = vmatpush.msra.mxu0 0.0
    %519 = vmatpush.msra.mxu0 0.0
    %520 = vmatpush.msra.mxu0 0.0
    %521 = vmatpush.msra.mxu0 0.0
    %522 = vmatpush.msra.mxu0 0.0
    %523 = vmatpush.msra.mxu0 0.0
    %524 = vmatpush.msra.mxu0 0.0
    %525 = vmatpush.msra.mxu0 0.0
    %526 = vmatpush.msra.mxu0 0.0
    %527 = vmatpush.msra.mxu0 0.0
    %528 = vmatpush.msra.mxu0 0.0
    %529 = vmatpush.msra.mxu0 %v444
    %530 = vmatpush.msra.mxu0 %v440
    %531 = vmatpush.msra.mxu0 %v436
    %532 = vmatpush.msra.mxu0 %v432
    %533 = vmatmul.f32.gmra.mxu0 %v448
    %v534 = vpop.f32.mrf.mxu0
    %v535 = vadd.f32 %v133, %v534
    %536 = vmatmul.f32.gmra.mxu0 %v451
    %v537 = vpop.f32.mrf.mxu0
    %v538 = vadd.f32 %v138, %v537
    %539 = vmatmul.f32.gmra.mxu0 %v454
    %v540 = vpop.f32.mrf.mxu0
    %v541 = vadd.f32 %v143, %v540
    %542 = vmatmul.f32.gmra.mxu0 %v457
    %v543 = vpop.f32.mrf.mxu0
    %v544 = vadd.f32 %v148, %v543
    %545 = vdwg.mxu0
    %546 = vmatpush.msra.mxu0 0.0
    %547 = vmatpush.msra.mxu0 0.0
    %548 = vmatpush.msra.mxu0 0.0
    %549 = vmatpush.msra.mxu0 0.0
    %550 = vmatpush.msra.mxu0 0.0
    %551 = vmatpush.msra.mxu0 0.0
    %552 = vmatpush.msra.mxu0 0.0
    %553 = vmatpush.msra.mxu0 0.0
    %554 = vmatpush.msra.mxu0 0.0
    %555 = vmatpush.msra.mxu0 0.0
    %556 = vmatpush.msra.mxu0 0.0
    %557 = vmatpush.msra.mxu0 0.0
    %558 = vmatpush.msra.mxu0 %v445
    %559 = vmatpush.msra.mxu0 %v441
    %560 = vmatpush.msra.mxu0 %v437
    %561 = vmatpush.msra.mxu0 %v433
    %562 = vmatmul.f32.gmra.mxu0 %v448
    %v563 = vpop.f32.mrf.mxu0
    %v564 = vadd.f32 %v133, %v563
    %565 = vmatmul.f32.gmra.mxu0 %v451
    %v566 = vpop.f32.mrf.mxu0
    %v567 = vadd.f32 %v138, %v566
    %568 = vmatmul.f32.gmra.mxu0 %v454
    %v569 = vpop.f32.mrf.mxu0
    %v570 = vadd.f32 %v143, %v569
    %571 = vmatmul.f32.gmra.mxu0 %v457
    %v572 = vpop.f32.mrf.mxu0
    %v573 = vadd.f32 %v148, %v572
    %574 = vdwg.mxu0
    %v575 = vmax.f32 %v477, 0.0
    %v576 = vmax.f32 %v506, 0.0
    %v577 = vmax.f32 %v535, 0.0
    %v578 = vmax.f32 %v564, 0.0
    %v579 = vmax.f32 %v480, 0.0
    %v580 = vmax.f32 %v509, 0.0
    %v581 = vmax.f32 %v538, 0.0
    %v582 = vmax.f32 %v567, 0.0
    %v583 = vmax.f32 %v483, 0.0
    %v584 = vmax.f32 %v512, 0.0
    %v585 = vmax.f32 %v541, 0.0
    %v586 = vmax.f32 %v570, 0.0
    %v587 = vmax.f32 %v486, 0.0
    %v588 = vmax.f32 %v515, 0.0
    %v589 = vmax.f32 %v544, 0.0
    %v590 = vmax.f32 %v573, 0.0
    %v592 = vsel %vm446, %v100, 0
    %594 = vmatpush.msra.mxu0 0.0
    %595 = vmatpush.msra.mxu0 0.0
    %596 = vmatpush.msra.mxu0 0.0
    %597 = vmatpush.msra.mxu0 0.0
    %598 = vmatpush.msra.mxu0 0.0
    %599 = vmatpush.msra.mxu0 0.0
    %600 = vmatpush.msra.mxu0 0.0
    %601 = vmatpush.msra.mxu0 0.0
    %602 = vmatpush.msra.mxu0 0.0
    %603 = vmatpush.msra.mxu0 0.0
    %604 = vmatpush.msra.mxu0 0.0
    %605 = vmatpush.msra.mxu0 0.0
    %606 = vmatpush.msra.mxu0 %v587
    %607 = vmatpush.msra.mxu0 %v583
    %608 = vmatpush.msra.mxu0 %v579
    %609 = vmatpush.msra.mxu0 %v575
    %610 = vmatmul.f32.gmra.mxu0 %v592
    %v611 = vpop.f32.mrf.mxu0
    %v612 = vadd.f32 %v153, %v611
    %613 = vdwg.mxu0
    %614 = vmatpush.msra.mxu0 0.0
    %615 = vmatpush.msra.mxu0 0.0
    %616 = vmatpush.msra.mxu0 0.0
    %617 = vmatpush.msra.mxu0 0.0
    %618 = vmatpush.msra.mxu0 0.0
    %619 = vmatpush.msra.mxu0 0.0
    %620 = vmatpush.msra.mxu0 0.0
    %621 = vmatpush.msra.mxu0 0.0
    %622 = vmatpush.msra.mxu0 0.0
    %623 = vmatpush.msra.mxu0 0.0
    %624 = vmatpush.msra.mxu0 0.0
    %625 = vmatpush.msra.mxu0 0.0
    %626 = vmatpush.msra.mxu0 %v588
    %627 = vmatpush.msra.mxu0 %v584
    %628 = vmatpush.msra.mxu0 %v580
    %629 = vmatpush.msra.mxu0 %v576
    %630 = vmatmul.f32.gmra.mxu0 %v592
    %v631 = vpop.f32.mrf.mxu0
    %v632 = vadd.f32 %v153, %v631
    %633 = vdwg.mxu0
    %634 = vmatpush.msra.mxu0 0.0
    %635 = vmatpush.msra.mxu0 0.0
    %636 = vmatpush.msra.mxu0 0.0
    %637 = vmatpush.msra.mxu0 0.0
    %638 = vmatpush.msra.mxu0 0.0
    %639 = vmatpush.msra.mxu0 0.0
    %640 = vmatpush.msra.mxu0 0.0
    %641 = vmatpush.msra.mxu0 0.0
    %642 = vmatpush.msra.mxu0 0.0
    %643 = vmatpush.msra.mxu0 0.0
    %644 = vmatpush.msra.mxu0 0.0
    %645 = vmatpush.msra.mxu0 0.0
    %646 = vmatpush.msra.mxu0 %v589
    %647 = vmatpush.msra.mxu0 %v585
    %648 = vmatpush.msra.mxu0 %v581
    %649 = vmatpush.msra.mxu0 %v577
    %650 = vmatmul.f32.gmra.mxu0 %v592
    %v651 = vpop.f32.mrf.mxu0
    %v652 = vadd.f32 %v153, %v651
    %653 = vdwg.mxu0
    %654 = vmatpush.msra.mxu0 0.0
    %655 = vmatpush.msra.mxu0 0.0
    %656 = vmatpush.msra.mxu0 0.0
    %657 = vmatpush.msra.mxu0 0.0
    %658 = vmatpush.msra.mxu0 0.0
    %659 = vmatpush.msra.mxu0 0.0
    %660 = vmatpush.msra.mxu0 0.0
    %661 = vmatpush.msra.mxu0 0.0
    %662 = vmatpush.msra.mxu0 0.0
    %663 = vmatpush.msra.mxu0 0.0
    %664 = vmatpush.msra.mxu0 0.0
    %665 = vmatpush.msra.mxu0 0.0
    %666 = vmatpush.msra.mxu0 %v590
    %667 = vmatpush.msra.mxu0 %v586
    %668 = vmatpush.msra.mxu0 %v582
    %669 = vmatpush.msra.mxu0 %v578
    %670 = vmatmul.f32.gmra.mxu0 %v592
    %v671 = vpop.f32.mrf.mxu0
    %v672 = vadd.f32 %v153, %v671
    %673 = vdwg.mxu0
    %v674 = vxor.u32 %v612, 2147483648
    %v675 = vxor.u32 %v632, 2147483648
    %v676 = vxor.u32 %v652, 2147483648
    %v677 = vxor.u32 %v672, 2147483648
    %v678 = vmul.f32 %v674, 1.442695
    %v679 = vpow.pop %v678
    %v680 = vmul.f32 %v675, 1.442695
    %v681 = vpow.pop %v680
    %v682 = vmul.f32 %v676, 1.442695
    %v683 = vpow.pop %v682
    %v684 = vmul.f32 %v677, 1.442695
    %v685 = vpow.pop %v684
    %v686 = vadd.f32 %v679, 1.0
    %v687 = vadd.f32 %v681, 1.0
    %v688 = vadd.f32 %v683, 1.0
    %v689 = vadd.f32 %v685, 1.0
    %v690 = vrcp.pop %v686
    %v691 = vmul.f32 %v686, %v690
    %v692 = vsub.f32 1.0, %v691
    %v693 = vmul.f32 %v690, %v692
    %v694 = vadd.f32 %v690, %v693
    %vm695 = vweird.f32 %v686
    %vm696 = vweird.f32 %v690
    %vm697 = vmor %vm695, %vm696
    %v698 = vsel %vm697, %v690, %v694
    %v699 = vand.u32 2147483647, %v686
    %vm700 = vcmp.eq.f32.partialorder %v699, 8.507059e+37
    %v701 = vand.u32 %v686, 2147483648
    %v702 = vor.u32 1.1754944e-38, %v701
    %v703 = vsel %vm700, %v702, %v698
    %v704 = vmul.f32 1.0, %v703
    %v705 = vrcp.pop %v687
    %v706 = vmul.f32 %v687, %v705
    %v707 = vsub.f32 1.0, %v706
    %v708 = vmul.f32 %v705, %v707
    %v709 = vadd.f32 %v705, %v708
    %vm710 = vweird.f32 %v687
    %vm711 = vweird.f32 %v705
    %vm712 = vmor %vm710, %vm711
    %v713 = vsel %vm712, %v705, %v709
    %v714 = vand.u32 2147483647, %v687
    %vm715 = vcmp.eq.f32.partialorder %v714, 8.507059e+37
    %v716 = vand.u32 %v687, 2147483648
    %v717 = vor.u32 1.1754944e-38, %v716
    %v718 = vsel %vm715, %v717, %v713
    %v719 = vmul.f32 1.0, %v718
    %v720 = vrcp.pop %v688
    %v721 = vmul.f32 %v688, %v720
    %v722 = vsub.f32 1.0, %v721
    %v723 = vmul.f32 %v720, %v722
    %v724 = vadd.f32 %v720, %v723
    %vm725 = vweird.f32 %v688
    %vm726 = vweird.f32 %v720
    %vm727 = vmor %vm725, %vm726
    %v728 = vsel %vm727, %v720, %v724
    %v729 = vand.u32 2147483647, %v688
    %vm730 = vcmp.eq.f32.partialorder %v729, 8.507059e+37
    %v731 = vand.u32 %v688, 2147483648
    %v732 = vor.u32 1.1754944e-38, %v731
    %v733 = vsel %vm730, %v732, %v728
    %v734 = vmul.f32 1.0, %v733
    %v735 = vrcp.pop %v689
    %v736 = vmul.f32 %v689, %v735
    %v737 = vsub.f32 1.0, %v736
    %v738 = vmul.f32 %v735, %v737
    %v739 = vadd.f32 %v735, %v738
    %vm740 = vweird.f32 %v689
    %vm741 = vweird.f32 %v735
    %vm742 = vmor %vm740, %vm741
    %v743 = vsel %vm742, %v735, %v739
    %v744 = vand.u32 2147483647, %v689
    %vm745 = vcmp.eq.f32.partialorder %v744, 8.507059e+37
    %v746 = vand.u32 %v689, 2147483648
    %v747 = vor.u32 1.1754944e-38, %v746
    %v748 = vsel %vm745, %v747, %v743
    %v749 = vmul.f32 1.0, %v748
    %750 = vst [vmem:[#allocation7] sm:$0xff] %v704
    %751 = vst [vmem:[#allocation7 + $0x8] sm:$0xff] %v719
    %752 = vst [vmem:[#allocation7 + $0x10] sm:$0xff] %v734
    %753 = vst [vmem:[#allocation7 + $0x18] sm:$0xff] %v749
    // Predicated region
    $region34: #{tpu_custom_call.1} parent=1 // pred_check
      _
    $region35: #{tpu_custom_call.1} parent=1 // pred_check_branch
      %755 = sbr.rel (0) target = $region37
    $region36: #{tpu_custom_call.1} parent=1 // pred_region
      %757 = vsyncadd [#allocation4], 0
      %s759 = sshll.u32 [#allocation7], 4
      %s760 = int_to_ptr.vmem [resolvable:$true] %s759
      %s761 = sshll.u32 %s6, 4
      %s762 = int_to_ptr.hbm [resolvable:$true] %s761
      %764 = dma.vmem_to_hbm [thread:$0]  %s760, 512, %s762, [#allocation4]
    $region37: #{tpu_custom_call.1} parent=1 // pred_fallthru
      _
    // Predicated region
    $region38: #{tpu_custom_call.1} parent=1 // pred_check
      _
    $region39: #{tpu_custom_call.1} parent=1 // pred_check_branch
      %766 = sbr.rel (0) target = $region41
    $region40: #{tpu_custom_call.1} parent=1 // pred_region
      %768 = dma.done [#allocation4], 512
    $region41: #{tpu_custom_call.1} parent=1 // pred_fallthru
      _
    %769 = vsyncpa [#allocation3], 1
    %770 = vsyncpa [#allocation6], 1
    %771 = vsyncpa [#allocation4], 1

</llo_original>
